<compile_context>
chip_gen: v5e
topology: v5e:2x2
jax: 0.10.0
libtpu: 0.0.40
codegen_flags: <defaults>
</compile_context>

<pallas_src>
import jax
import jax.numpy as jnp
from jax.experimental import pallas as pl
from jax.experimental.pallas import tpu as pltpu


def _round_up(x, m):
    return (x + m - 1) // m * m


def make_attention_kernel(temperature, block_b, S, Hp, transpose_out):
    def attention_kernel(x_ref, w1_ref, b1_ref, w2_ref, b2k_ref, b2q_ref,
                         out_ref):
        # x_ref  : (block_b * S, D)   matmul dtype (bf16 by default)
        # w1_ref : (D, 2*Hp)          matmul dtype (keys | queries, lane-padded)
        # b1_ref : (1, 2*Hp)          f32
        # w2_ref : (2*Hp, Ap)         matmul dtype (keys rows | queries rows)
        # b2k_ref: (1, Ap)            f32
        # b2q_ref: (1, Ap)            f32
        # out_ref: (S, block_b) if transpose_out else (block_b, S), f32
        Ap = w2_ref.shape[1]

        # ---- fused layer-1 for keys and queries: one (Bt*S, D) @ (D, 2*Hp)
        #      MXU matmul with f32 accumulation; bias/ReLU stay f32. ----------
        h = jnp.dot(x_ref[...], w1_ref[...],
                    preferred_element_type=jnp.float32) + b1_ref[...]
        h = jnp.maximum(h, 0.0)                      # (Bt*S, 2*Hp) f32
        h_k = h[:, :Hp]          # lane-aligned slices (Hp is a multiple of 128)
        h_q = h[:, Hp:]

        # ---- keys layer-2 -> k : (Bt, S, Ap) --------------------------------
        k = jnp.dot(h_k.astype(w2_ref.dtype), w2_ref[:Hp, :],
                    preferred_element_type=jnp.float32) + b2k_ref[...]
        k3 = k.reshape(block_b, S, Ap)

        # ---- DeepSet-pooled query layer-2 -> q : (Bt, Ap) --------------------
        pooled = jnp.mean(h_q.reshape(block_b, S, Hp), axis=1)    # (Bt, Hp)
        q = jnp.dot(pooled.astype(w2_ref.dtype), w2_ref[Hp:, :],
                    preferred_element_type=jnp.float32) + b2q_ref[...]

        # ---- q . k^T with M=1 per batch: VPU multiply + XLU lane reduce
        #      (avoids block_b serialized (1,A)x(A,S) MXU calls). -------------
        scores = jnp.sum(k3 * q[:, None, :], axis=-1)             # (Bt, S)

        # ---- max-scaling + softmax over the set axis -------------------------
        # NOTE: dividing by the row max (rather than subtracting it) matches
        # the PyTorch module; it is NaN/sign-fragile if max <= 0, as in the
        # original.  Exact divide here (inside the exp argument); approx
        # reciprocal only for the final normalization.
        max_s = jnp.max(scores, axis=-1, keepdims=True)           # (Bt, 1)
        scaled = (temperature * scores) / max_s
        m = jnp.max(scaled, axis=-1, keepdims=True)
        e = jnp.exp(scaled - m)
        denom = jnp.sum(e, axis=-1, keepdims=True)
        attn = e * pl.reciprocal(denom, approx=True)              # (Bt, S)

        if transpose_out:
            # S < 128: batch on the lane axis -> lane-dense stores.
            out_ref[...] = attn.T.astype(out_ref.dtype)
        else:
            out_ref[...] = attn.astype(out_ref.dtype)

    return attention_kernel


def _pick_block_b(B, S, D, Hp, Ap, x_bytes):
    """Batch tile from a ~24 MiB VMEM working-set budget (safe on all gens)."""
    s_pad = _round_up(S, 8)
    # per-batch-element bytes: double-buffered x tile + f32 h/k + out tile
    per_b = (2 * s_pad * _round_up(D, 128) * x_bytes
             + s_pad * (2 * Hp + Ap) * 4
             + 2 * max(_round_up(S, 128), 128) * 4)
    budget = 24 << 20
    bb = max(1, budget // per_b)
    bb = min(bb, B)
    # v7x has two TensorCores: keep >= 2 grid steps (when B is big enough) so
    # the "parallel" grid axis can shard across them.  v5e/v6e are unaffected.
    if B >= 16:
        bb = min(bb, -(-B // 2))
    if bb < B:
        # Multiple grid steps: keep blocks (8,128)-friendly.
        bb = (bb // 128) * 128 if bb >= 128 else max(8, (bb // 8) * 8)
    return int(bb)


def _vmem_estimate(block_b, S, D, Hp, Ap, x_bytes):
    s_pad = _round_up(S, 8)
    n = block_b * s_pad
    est = 2 * n * _round_up(D, 128) * x_bytes            # x tile, double-buffered
    est += n * (2 * Hp + Ap) * 4                         # h + k intermediates
    est += 2 * (D + Ap) * 2 * Hp * x_bytes               # weights (x2 buffers)
    est += 2 * (2 * Hp + 2 * Ap) * 4                     # biases
    est += 2 * block_b * max(_round_up(S, 128), 128) * 4  # output tile
    return est


def attention_forward(x, params, temperature, *, block_b=None,
                      matmul_dtype=jnp.bfloat16):
    """x: (B, S, D) float32 -> (B, 1, S) float32 attention weights.

    matmul_dtype: dtype fed to the MXU for x / W1 / W2 (bf16 by default on all
                  TPU generations; accumulation, bias, ReLU and softmax are
                  always f32).  Pass None for a full-f32 path.
    block_b:      batch elements per grid step (default: VMEM-budget derived).
    Note: the softmax denominator uses an approx reciprocal, so rows sum to 1
    only within ~1e-3.
    """
    B, S, D = x.shape
    kw1, kb1, kw2, kb2, qw1, qb1, qw2, qb2 = params
    H = kw1.shape[1]
    A = kw2.shape[1]
    Hp = _round_up(H, 128)   # pad each packed-W1 half to a 128-lane boundary
    Ap = _round_up(A, 128)

    # ---- pack + zero-pad parameters (padding is exact: zeros contribute 0) --
    def pad2(a, rows, cols):
        return jnp.pad(a, ((0, rows - a.shape[0]), (0, cols - a.shape[1])))

    w1 = jnp.concatenate([pad2(kw1, D, Hp), pad2(qw1, D, Hp)], axis=1)    # (D, 2Hp)
    b1 = jnp.concatenate([pad2(kb1, 1, Hp), pad2(qb1, 1, Hp)], axis=1)    # (1, 2Hp)
    w2 = jnp.concatenate([pad2(kw2, Hp, Ap), pad2(qw2, Hp, Ap)], axis=0)  # (2Hp, Ap)
    b2k = pad2(kb2, 1, Ap)                                                # (1, Ap)
    b2q = pad2(qb2, 1, Ap)                                                # (1, Ap)

    if matmul_dtype is None:
        matmul_dtype = x.dtype
    x_in = x.astype(matmul_dtype)
    w1 = w1.astype(matmul_dtype)
    w2 = w2.astype(matmul_dtype)
    b1 = b1.astype(jnp.float32)
    b2k = b2k.astype(jnp.float32)
    b2q = b2q.astype(jnp.float32)
    x_bytes = jnp.dtype(matmul_dtype).itemsize

    # ---- batch tile selection ------------------------------------------------
    if block_b is None:
        block_b = _pick_block_b(B, S, D, Hp, Ap, x_bytes)
    grid_b = pl.cdiv(B, block_b)
    B_pad = grid_b * block_b
    if B_pad != B:
        x_in = jnp.pad(x_in, ((0, B_pad - B), (0, 0), (0, 0)))
    # Flatten in the wrapper (free / contiguous in HBM): the kernel sees a
    # clean 2D (block_b*S, D) tile with no in-kernel relayout of x.
    # (When S is a multiple of 8 the in-kernel (Bt*S,·)->(Bt,S,·) reshapes are
    # pure retiles.)
    x_flat = x_in.reshape(B_pad * S, D)

    # Transposed (S, B_pad) output only pays off when S < 128 and the batch
    # tile is lane-aligned (or there is a single grid step).
    transpose_out = (S < 128) and (grid_b == 1 or block_b % 128 == 0)
    if transpose_out:
        out_shape = jax.ShapeDtypeStruct((S, B_pad), jnp.float32)
        out_spec = pl.BlockSpec((S, block_b), lambda g: (0, g))
    else:
        out_shape = jax.ShapeDtypeStruct((B_pad, S), jnp.float32)
        out_spec = pl.BlockSpec((block_b, S), lambda g: (g, 0))

    const = lambda g: (0, 0)

    # ---- compiler params: raise scoped VMEM only when the tile needs it ------
    est = _vmem_estimate(block_b, S, D, Hp, Ap, x_bytes)
    cp_kwargs = dict(dimension_semantics=("parallel",))
    if est > (12 << 20):
        # Defaults: 16 MiB scoped on v5e, 32 MiB on v6e/v7x.  Stay well under
        # v7x's 64 MiB physical VMEM.
        cp_kwargs["vmem_limit_bytes"] = int(min(max(2 * est, 32 << 20), 56 << 20))

    out = pl.pallas_call(
        make_attention_kernel(float(temperature), block_b, S, Hp, transpose_out),
        out_shape=out_shape,
        grid_spec=pltpu.PrefetchScalarGridSpec(
            num_scalar_prefetch=0,
            grid=(grid_b,),
            in_specs=[
                pl.BlockSpec((block_b * S, D), lambda g: (g, 0)),  # x (flat)
                pl.BlockSpec((D, 2 * Hp), const),                  # W1 packed
                pl.BlockSpec((1, 2 * Hp), const),                  # b1 packed
                pl.BlockSpec((2 * Hp, Ap), const),                 # W2 packed
                pl.BlockSpec((1, Ap), const),                      # b2 keys
                pl.BlockSpec((1, Ap), const),                      # b2 queries
            ],
            out_specs=out_spec,
        ),
        compiler_params=pltpu.CompilerParams(**cp_kwargs),
    )(x_flat, w1, b1, w2, b2k, b2q)

    # Pure layout plumbing back to (B, 1, S); padded batch rows are sliced off.
    if transpose_out:
        return out[:, :B].T[:, None, :]
    return out[:B, None, :]


def reference_forward(x, params, temperature, matmul_dtype=None):
    """Pure-JAX reference matching the PyTorch forward semantics.

    If matmul_dtype is given, mirrors the kernel's casting (bf16 operands,
    f32 accumulation) so the comparison isolates kernel-specific error.
    """
    kw1, kb1, kw2, kb2, qw1, qb1, qw2, qb2 = params
    cast = (lambda a: a) if matmul_dtype is None else (
        lambda a: a.astype(matmul_dtype))
    xc = cast(x)
    h_k = jnp.maximum(
        jnp.einsum('bsd,dh->bsh', xc, cast(kw1),
                   preferred_element_type=jnp.float32) + kb1, 0.0)
    k = jnp.einsum('bsh,ha->bsa', cast(h_k), cast(kw2),
                   preferred_element_type=jnp.float32) + kb2        # (B, S, A)
    h_q = jnp.maximum(
        jnp.einsum('bsd,dh->bsh', xc, cast(qw1),
                   preferred_element_type=jnp.float32) + qb1, 0.0)
    pooled = jnp.mean(h_q, axis=1)                                  # (B, H)
    q = jnp.einsum('bh,ha->ba', cast(pooled), cast(qw2),
                   preferred_element_type=jnp.float32) + qb2        # (B, A)
    q = q[:, None, :]                                               # (B, 1, A)
    qkt = jnp.einsum('bqa,bsa->bqs', q, k)                          # (B, 1, S)
    max_qkt = jnp.max(qkt, axis=-1, keepdims=True)
    scaled = temperature * qkt / max_qkt
    return jax.nn.softmax(scaled, axis=-1)


if __name__ == "__main__":
    # Small, shape-consistent config:
    #   n_features=31, target_size=1 -> D=32; attention_dim A=32; hidden H=32
    B, S = 2, 8
    n_features, target_size = 31, 1
    D = n_features + target_size
    H = 32
    A = 32
    temperature = 2.0

    key = jax.random.PRNGKey(0)
    ks = jax.random.split(key, 9)
    x = jax.random.normal(ks[0], (B, S, D), dtype=jnp.float32)

    def init_w(k, shape, fan_in):
        return (jax.random.normal(k, shape, dtype=jnp.float32)
                / jnp.sqrt(jnp.float32(fan_in)))

    params = (
        init_w(ks[1], (D, H), D),                                    # keys W1
        0.01 * jax.random.normal(ks[2], (1, H), dtype=jnp.float32),  # keys b1
        init_w(ks[3], (H, A), H),                                    # keys W2
        0.01 * jax.random.normal(ks[4], (1, A), dtype=jnp.float32),  # keys b2
        init_w(ks[5], (D, H), D),                                    # queries W1
        0.01 * jax.random.normal(ks[6], (1, H), dtype=jnp.float32),  # queries b1
        init_w(ks[7], (H, A), H),                                    # queries W2
        0.01 * jax.random.normal(ks[8], (1, A), dtype=jnp.float32),  # queries b2
    )

    # Default path: bf16 matmuls (f32 accumulation / bias / ReLU / softmax).
    out_bf16 = jax.block_until_ready(attention_forward(x, params, temperature))
    ref_bf16 = reference_forward(x, params, temperature,
                                 matmul_dtype=jnp.bfloat16)
    assert out_bf16.shape == (B, 1, S)
    assert bool(jnp.all(jnp.isfinite(out_bf16)))
    assert jnp.allclose(out_bf16, ref_bf16, atol=5e-3, rtol=5e-3), \
        "bf16 path mismatch vs reference"
    assert jnp.allclose(jnp.sum(out_bf16, axis=-1), 1.0, atol=5e-3)

    # Full-f32 path: tight check against the pure-JAX f32 reference.
    out_f32 = jax.block_until_ready(
        attention_forward(x, params, temperature, matmul_dtype=None))
    ref_f32 = reference_forward(x, params, temperature)
    assert out_f32.shape == (B, 1, S)
    assert jnp.allclose(out_f32, ref_f32, atol=5e-3, rtol=5e-3), \
        "f32 path mismatch vs reference"
    assert jnp.allclose(jnp.sum(out_f32, axis=-1), 1.0, atol=5e-3)

    print("KERNEL_OK")
</pallas_src>

<mosaic_0001>
module attributes {stable_mosaic.version = 11 : i64} {
  func.func @attention_kernel(%arg0: i32, %arg1: memref<16x32xbf16, #tpu.memory_space<vmem>>, %arg2: memref<32x256xbf16, #tpu.memory_space<vmem>>, %arg3: memref<1x256xf32, #tpu.memory_space<vmem>>, %arg4: memref<256x128xbf16, #tpu.memory_space<vmem>>, %arg5: memref<1x128xf32, #tpu.memory_space<vmem>>, %arg6: memref<1x128xf32, #tpu.memory_space<vmem>>, %arg7: memref<8x2xf32, #tpu.memory_space<vmem>>) attributes {dimension_semantics = [#tpu.dimension_semantics<parallel>], iteration_bounds = array<i64: 1>, scalar_prefetch = 0 : i64, scratch_operands = 0 : i64, tpu.core_type = #tpu.core_type<tc>, window_params = [{transform_indices = @transform_0, window_bounds = array<i64: 16, 32>}, {pipeline_mode = #tpu.pipeline_mode<synchronous>, transform_indices = @transform_1, window_bounds = array<i64: 32, 256>}, {pipeline_mode = #tpu.pipeline_mode<synchronous>, transform_indices = @transform_2, window_bounds = array<i64: 1, 256>}, {pipeline_mode = #tpu.pipeline_mode<synchronous>, transform_indices = @transform_3, window_bounds = array<i64: 256, 128>}, {pipeline_mode = #tpu.pipeline_mode<synchronous>, transform_indices = @transform_4, window_bounds = array<i64: 1, 128>}, {pipeline_mode = #tpu.pipeline_mode<synchronous>, transform_indices = @transform_5, window_bounds = array<i64: 1, 128>}, {transform_indices = @transform_6, window_bounds = array<i64: 8, 2>}]} {
    %c0 = arith.constant 0 : index
    %c0_0 = arith.constant 0 : index
    %0 = vector.load %arg1[%c0, %c0_0] : memref<16x32xbf16, #tpu.memory_space<vmem>>, vector<16x32xbf16>
    %c0_1 = arith.constant 0 : index
    %c0_2 = arith.constant 0 : index
    %1 = vector.load %arg2[%c0_1, %c0_2] : memref<32x256xbf16, #tpu.memory_space<vmem>>, vector<32x256xbf16>
    %cst = arith.constant dense<0.000000e+00> : vector<16x256xf32>
    %2 = tpu.matmul %0, %1, %cst {dimension_numbers = #tpu.dot_dimension_numbers<[1], [0], [0], [1], [0, 0, 1, 1], [], []>} : vector<16x32xbf16>, vector<32x256xbf16>, vector<16x256xf32> -> vector<16x256xf32>
    %c0_3 = arith.constant 0 : index
    %c0_4 = arith.constant 0 : index
    %3 = vector.load %arg3[%c0_3, %c0_4] : memref<1x256xf32, #tpu.memory_space<vmem>>, vector<1x256xf32>
    %4 = vector.broadcast %3 : vector<1x256xf32> to vector<16x256xf32>
    %5 = arith.addf %2, %4 : vector<16x256xf32>
    %cst_5 = arith.constant 0.000000e+00 : f32
    %6 = vector.broadcast %cst_5 : f32 to vector<16x256xf32>
    %7 = arith.maximumf %5, %6 : vector<16x256xf32>
    %8 = vector.extract_strided_slice %7 {offsets = [0, 0], sizes = [16, 128], strides = [1, 1]} : vector<16x256xf32> to vector<16x128xf32>
    %9 = vector.extract_strided_slice %7 {offsets = [0, 128], sizes = [16, 128], strides = [1, 1]} : vector<16x256xf32> to vector<16x128xf32>
    %10 = arith.truncf %8 : vector<16x128xf32> to vector<16x128xbf16>
    %c0_6 = arith.constant 0 : index
    %c0_7 = arith.constant 0 : index
    %11 = vector.load %arg4[%c0_6, %c0_7] : memref<256x128xbf16, #tpu.memory_space<vmem>>, vector<128x128xbf16>
    %cst_8 = arith.constant dense<0.000000e+00> : vector<16x128xf32>
    %12 = tpu.matmul %10, %11, %cst_8 {dimension_numbers = #tpu.dot_dimension_numbers<[1], [0], [0], [1], [0, 0, 1, 1], [], []>} : vector<16x128xbf16>, vector<128x128xbf16>, vector<16x128xf32> -> vector<16x128xf32>
    %c0_9 = arith.constant 0 : index
    %c0_10 = arith.constant 0 : index
    %13 = vector.load %arg5[%c0_9, %c0_10] : memref<1x128xf32, #tpu.memory_space<vmem>>, vector<1x128xf32>
    %14 = vector.broadcast %13 : vector<1x128xf32> to vector<16x128xf32>
    %15 = arith.addf %12, %14 : vector<16x128xf32>
    %16 = vector.shape_cast %15 : vector<16x128xf32> to vector<2x8x128xf32>
    %17 = vector.shape_cast %9 : vector<16x128xf32> to vector<2x8x128xf32>
    %cst_11 = arith.constant dense<0.000000e+00> : vector<2x128xf32>
    %18 = vector.multi_reduction <add>, %17, %cst_11 [1] : vector<2x8x128xf32> to vector<2x128xf32>
    %cst_12 = arith.constant 8.000000e+00 : f32
    %19 = vector.broadcast %cst_12 : f32 to vector<2x128xf32>
    %20 = arith.divf %18, %19 : vector<2x128xf32>
    %21 = arith.truncf %20 : vector<2x128xf32> to vector<2x128xbf16>
    %c128 = arith.constant 128 : index
    %c0_13 = arith.constant 0 : index
    %22 = vector.load %arg4[%c128, %c0_13] : memref<256x128xbf16, #tpu.memory_space<vmem>>, vector<128x128xbf16>
    %cst_14 = arith.constant dense<0.000000e+00> : vector<2x128xf32>
    %23 = tpu.matmul %21, %22, %cst_14 {dimension_numbers = #tpu.dot_dimension_numbers<[1], [0], [0], [1], [0, 0, 1, 1], [], []>} : vector<2x128xbf16>, vector<128x128xbf16>, vector<2x128xf32> -> vector<2x128xf32>
    %c0_15 = arith.constant 0 : index
    %c0_16 = arith.constant 0 : index
    %24 = vector.load %arg6[%c0_15, %c0_16] : memref<1x128xf32, #tpu.memory_space<vmem>>, vector<1x128xf32>
    %25 = vector.broadcast %24 : vector<1x128xf32> to vector<2x128xf32>
    %26 = arith.addf %23, %25 : vector<2x128xf32>
    %27 = vector.shape_cast %26 : vector<2x128xf32> to vector<2x1x128xf32>
    %28 = vector.broadcast %27 : vector<2x1x128xf32> to vector<2x8x128xf32>
    %29 = arith.mulf %16, %28 : vector<2x8x128xf32>
    %cst_17 = arith.constant dense<0.000000e+00> : vector<2x8xf32>
    %30 = vector.multi_reduction <add>, %29, %cst_17 [2] : vector<2x8x128xf32> to vector<2x8xf32>
    %cst_18 = arith.constant dense<0xFF800000> : vector<2xf32>
    %31 = vector.multi_reduction <maximumf>, %30, %cst_18 [1] : vector<2x8xf32> to vector<2xf32>
    %32 = vector.shape_cast %31 : vector<2xf32> to vector<2x1xf32>
    %cst_19 = arith.constant 2.000000e+00 : f32
    %33 = vector.broadcast %cst_19 : f32 to vector<2x8xf32>
    %34 = arith.mulf %33, %30 : vector<2x8xf32>
    %35 = vector.broadcast %32 : vector<2x1xf32> to vector<2x8xf32>
    %36 = arith.divf %34, %35 : vector<2x8xf32>
    %cst_20 = arith.constant dense<0xFF800000> : vector<2xf32>
    %37 = vector.multi_reduction <maximumf>, %36, %cst_20 [1] : vector<2x8xf32> to vector<2xf32>
    %38 = vector.shape_cast %37 : vector<2xf32> to vector<2x1xf32>
    %39 = vector.broadcast %38 : vector<2x1xf32> to vector<2x8xf32>
    %40 = arith.subf %36, %39 : vector<2x8xf32>
    %41 = math.exp %40 : vector<2x8xf32>
    %cst_21 = arith.constant dense<0.000000e+00> : vector<2xf32>
    %42 = vector.multi_reduction <add>, %41, %cst_21 [1] : vector<2x8xf32> to vector<2xf32>
    %43 = vector.shape_cast %42 : vector<2xf32> to vector<2x1xf32>
    %44 = tpu.reciprocal %43 {approx = true} : vector<2x1xf32> -> vector<2x1xf32>
    %45 = vector.broadcast %44 : vector<2x1xf32> to vector<2x8xf32>
    %46 = arith.mulf %41, %45 : vector<2x8xf32>
    %47 = tpu.transpose %46, [1, 0] : vector<2x8xf32> -> vector<8x2xf32>
    %c0_22 = arith.constant 0 : index
    %c0_23 = arith.constant 0 : index
    %48 = vector.load %arg7[%c0_22, %c0_23] : memref<8x2xf32, #tpu.memory_space<vmem>>, vector<8x2xf32>
    tpu.vector_store %arg7[%c0_22, %c0_23], %47 {strides = array<i32>} : memref<8x2xf32, #tpu.memory_space<vmem>>, vector<8x2xf32>,
    return
  }
  func.func @transform_0(%arg0: i32) -> (i32, i32) {
    %c0_i32 = arith.constant 0 : i32
    %c0_i32_0 = arith.constant 0 : i32
    return %arg0, %c0_i32 : i32, i32
  }
  func.func @transform_1(%arg0: i32) -> (i32, i32) {
    %c0_i32 = arith.constant 0 : i32
    %c0_i32_0 = arith.constant 0 : i32
    %c0_i32_1 = arith.constant 0 : i32
    return %c0_i32, %c0_i32_0 : i32, i32
  }
  func.func @transform_2(%arg0: i32) -> (i32, i32) {
    %c0_i32 = arith.constant 0 : i32
    %c0_i32_0 = arith.constant 0 : i32
    %c0_i32_1 = arith.constant 0 : i32
    return %c0_i32, %c0_i32_0 : i32, i32
  }
  func.func @transform_3(%arg0: i32) -> (i32, i32) {
    %c0_i32 = arith.constant 0 : i32
    %c0_i32_0 = arith.constant 0 : i32
    %c0_i32_1 = arith.constant 0 : i32
    return %c0_i32, %c0_i32_0 : i32, i32
  }
  func.func @transform_4(%arg0: i32) -> (i32, i32) {
    %c0_i32 = arith.constant 0 : i32
    %c0_i32_0 = arith.constant 0 : i32
    %c0_i32_1 = arith.constant 0 : i32
    return %c0_i32, %c0_i32_0 : i32, i32
  }
  func.func @transform_5(%arg0: i32) -> (i32, i32) {
    %c0_i32 = arith.constant 0 : i32
    %c0_i32_0 = arith.constant 0 : i32
    %c0_i32_1 = arith.constant 0 : i32
    return %c0_i32, %c0_i32_0 : i32, i32
  }
  func.func @transform_6(%arg0: i32) -> (i32, i32) {
    %c0_i32 = arith.constant 0 : i32
    %c0_i32_0 = arith.constant 0 : i32
    return %c0_i32, %arg0 : i32, i32
  }
}

</mosaic_0001>

<llo_original>
// kernel: tpu_custom_call.1
$region0: #{tpu_custom_call.1}
  #allocation0 [shape = 'u32[]', space=smem, size = 0x4, offset = 0x4, fixed_abs, tag = 'smem constant byte address 0x4 - core index']
  #allocation1 [shape = 'u32[72,128]{1,0:T(1,128)}', space=vmem, size = 0x9000, scoped, tag = 'internal scratch']
  %s0 = inlined_call_operand.hbm [shape: bf16[16,32], index: 0, kind: input, shape index: {}]
  %s1 = inlined_call_operand.hbm [shape: bf16[32,256], index: 1, kind: input, shape index: {}]
  %s2 = inlined_call_operand.hbm [shape: f32[1,256], index: 2, kind: input, shape index: {}]
  %s3 = inlined_call_operand.hbm [shape: bf16[256,128], index: 3, kind: input, shape index: {}]
  %s4 = inlined_call_operand.vmem [shape: f32[1,128], index: 4, kind: input, shape index: {}]
  %s5 = inlined_call_operand.vmem [shape: f32[1,128], index: 5, kind: input, shape index: {}]
  %s6 = inlined_call_operand.vmem [shape: f32[8,2], index: 6, kind: output, shape index: {}]
  %s7 = sld [smem:[#allocation0]]
  $region50: #{tpu_custom_call.1} parent=0
    _
  %s9 = ssub.s32 1, %s7
  %s10 = scalar_select 0, %s9, %s7
  $region1: #{tpu_custom_call.1} parent=0
    #allocation2 [shape = 'u8[4096]{0}', space=vmem, size = 0x1000, scoped, tag = 'input window, operand 0, single buffered']
    #allocation3 [shape = 's32[1]{0}', space=sflag, size = 0x4, scoped, tag = 'scoped memory for tpu_custom_call.1']
    #allocation4 [shape = 'u8[16384]{0}', space=vmem, size = 0x4000, scoped, tag = 'input window, operand 1, single buffered']
    #allocation5 [shape = 's32[1]{0}', space=sflag, size = 0x4, scoped, tag = 'scoped memory for tpu_custom_call.1']
    #allocation6 [shape = 'u8[1024]{0}', space=vmem, size = 0x400, scoped, tag = 'input window, operand 2, single buffered']
    #allocation7 [shape = 'u8[65536]{0}', space=vmem, size = 0x10000, scoped, tag = 'input window, operand 3, single buffered']
    #allocation8 [shape = 's32[1]{0}', space=sflag, size = 0x4, scoped, tag = 'scoped memory for tpu_custom_call.1']
    %11 = vsyncpa [#allocation3], 0
    %12 = vsyncpa [#allocation5], 0
    %13 = vsyncpa [#allocation8], 0
    // Predicated region
    $region2: #{tpu_custom_call.1} parent=1 // pred_check
      _
    $region3: #{tpu_custom_call.1} parent=1 // pred_check_branch
      %15 = sbr.rel (0) target = $region5
    $region4: #{tpu_custom_call.1} parent=1 // pred_region
      %17 = vsyncadd [#allocation3], 0
      %s18 = sshll.u32 %s0, 4
      %s19 = int_to_ptr.hbm [resolvable:$true] %s18
      %s20 = sshll.u32 [#allocation2], 4
      %s21 = int_to_ptr.vmem [resolvable:$true] %s20
      %26 = dma.hbm_to_vmem [thread:$0]  %s19, 128, %s21, [#allocation3], 64, 64, 4
    $region5: #{tpu_custom_call.1} parent=1 // pred_fallthru
      _
    // Predicated region
    $region6: #{tpu_custom_call.1} parent=1 // pred_check
      _
    $region7: #{tpu_custom_call.1} parent=1 // pred_check_branch
      %28 = sbr.rel (0) target = $region9
    $region8: #{tpu_custom_call.1} parent=1 // pred_region
      %30 = vsyncadd [#allocation5], 0
      %s31 = sshll.u32 %s1, 4
      %s32 = int_to_ptr.hbm [resolvable:$true] %s31
      %s33 = sshll.u32 [#allocation4], 4
      %s34 = int_to_ptr.vmem [resolvable:$true] %s33
      %39 = dma.hbm_to_vmem [thread:$0]  %s32, 512, %s34, [#allocation5], 128, 128, 8
    $region9: #{tpu_custom_call.1} parent=1 // pred_fallthru
      _
    // Predicated region
    $region10: #{tpu_custom_call.1} parent=1 // pred_check
      _
    $region11: #{tpu_custom_call.1} parent=1 // pred_check_branch
      %41 = sbr.rel (0) target = $region13
    $region12: #{tpu_custom_call.1} parent=1 // pred_region
      %43 = vsyncadd [#allocation5], 0
      %s45 = sshll.u32 %s2, 4
      %s46 = int_to_ptr.hbm [resolvable:$true] %s45
      %s47 = sshll.u32 [#allocation6], 4
      %s48 = int_to_ptr.vmem [resolvable:$true] %s47
      %50 = dma.hbm_to_vmem [thread:$0]  %s46, 32, %s48, [#allocation5]
    $region13: #{tpu_custom_call.1} parent=1 // pred_fallthru
      _
    // Predicated region
    $region14: #{tpu_custom_call.1} parent=1 // pred_check
      _
    $region15: #{tpu_custom_call.1} parent=1 // pred_check_branch
      %52 = sbr.rel (0) target = $region17
    $region16: #{tpu_custom_call.1} parent=1 // pred_region
      %54 = vsyncadd [#allocation8], 0
      %s55 = sshll.u32 %s3, 4
      %s56 = int_to_ptr.hbm [resolvable:$true] %s55
      %s57 = sshll.u32 [#allocation7], 4
      %s58 = int_to_ptr.vmem [resolvable:$true] %s57
      %63 = dma.hbm_to_vmem [thread:$0]  %s56, 2048, %s58, [#allocation8], 64, 64, 4
    $region17: #{tpu_custom_call.1} parent=1 // pred_fallthru
      _
    // Predicated region
    $region18: #{tpu_custom_call.1} parent=1 // pred_check
      _
    $region19: #{tpu_custom_call.1} parent=1 // pred_check_branch
      %65 = sbr.rel (0) target = $region21
    $region20: #{tpu_custom_call.1} parent=1 // pred_region
      _
    $region21: #{tpu_custom_call.1} parent=1 // pred_fallthru
      _
    // Predicated region
    $region22: #{tpu_custom_call.1} parent=1 // pred_check
      _
    $region23: #{tpu_custom_call.1} parent=1 // pred_check_branch
      %67 = sbr.rel (0) target = $region25
    $region24: #{tpu_custom_call.1} parent=1 // pred_region
      _
    $region25: #{tpu_custom_call.1} parent=1 // pred_fallthru
      _
    // Predicated region
    $region26: #{tpu_custom_call.1} parent=1 // pred_check
      _
    $region27: #{tpu_custom_call.1} parent=1 // pred_check_branch
      %69 = sbr.rel (0) target = $region29
    $region28: #{tpu_custom_call.1} parent=1 // pred_region
      %71 = dma.done [#allocation3], 128
    $region29: #{tpu_custom_call.1} parent=1 // pred_fallthru
      _
    // Predicated region
    $region30: #{tpu_custom_call.1} parent=1 // pred_check
      _
    $region31: #{tpu_custom_call.1} parent=1 // pred_check_branch
      %73 = sbr.rel (0) target = $region33
    $region32: #{tpu_custom_call.1} parent=1 // pred_region
      %75 = dma.done [#allocation5], 512
    $region33: #{tpu_custom_call.1} parent=1 // pred_fallthru
      _
    // Predicated region
    $region34: #{tpu_custom_call.1} parent=1 // pred_check
      _
    $region35: #{tpu_custom_call.1} parent=1 // pred_check_branch
      %77 = sbr.rel (0) target = $region37
    $region36: #{tpu_custom_call.1} parent=1 // pred_region
      %79 = dma.done [#allocation5], 32
    $region37: #{tpu_custom_call.1} parent=1 // pred_fallthru
      _
    // Predicated region
    $region38: #{tpu_custom_call.1} parent=1 // pred_check
      _
    $region39: #{tpu_custom_call.1} parent=1 // pred_check_branch
      %81 = sbr.rel (0) target = $region41
    $region40: #{tpu_custom_call.1} parent=1 // pred_region
      %83 = dma.done [#allocation8], 2048
    $region41: #{tpu_custom_call.1} parent=1 // pred_fallthru
      _
    %v85 = vld [vmem:[#allocation2] sm:$0xf]
    %v86 = vld [vmem:[#allocation2 + $0x4] sm:$0xf]
    %v87 = vld [vmem:[#allocation4] sm:$0xff]
    %v88 = vld [vmem:[#allocation4 + $0x8] sm:$0xff]
    %v89 = vld [vmem:[#allocation4 + $0x10] sm:$0xff]
    %v90 = vld [vmem:[#allocation4 + $0x18] sm:$0xff]
    %v91 = vld [vmem:[#allocation6] sm:$0x3]
    %v93 = vperm.slane %v91, 0
    %v94 = vperm.slane %v91, 1
    %v99 = vunpack.c.l.b16 %v85
    %v100 = vunpack.c.l.b16 %v86
    %v101 = vpack.c.b16 %v100, %v99
    %v106 = vunpack.c.l.b16 %v87
    %v107 = vunpack.c.h.b16 %v87
    %v108 = vunpack.c.l.b16 %v88
    %v109 = vunpack.c.h.b16 %v88
    %v110 = vunpack.c.l.b16 %v89
    %v111 = vunpack.c.h.b16 %v89
    %v112 = vunpack.c.l.b16 %v90
    %v113 = vunpack.c.h.b16 %v90
    %v114 = vpack.c.b16 %v108, %v106
    %v115 = vpack.c.b16 %v109, %v107
    %v116 = vpack.c.b16 %v112, %v110
    %v117 = vpack.c.b16 %v113, %v111
    %vm122 = vcmask 261120
    %v124 = vsel %vm122, %v101, 0
    %126 = vmatpush.bf16.msra.mxu0 0
    %127 = vmatpush.bf16.msra.mxu0 0
    %128 = vmatpush.bf16.msra.mxu0 0
    %129 = vmatpush.bf16.msra.mxu0 0
    %130 = vmatpush.bf16.msra.mxu0 0
    %131 = vmatpush.bf16.msra.mxu0 0
    %132 = vmatpush.bf16.msra.mxu0 %v116
    %133 = vmatpush.bf16.msra.mxu0 %v114
    %134 = vmatmul.bf16.gmra.mxu0 %v124
    %v135 = vpop.f32.mrf.mxu0
    %v136 = vadd.f32 %v93, %v135
    %v137 = vpop.f32.mrf.mxu0
    %v138 = vadd.f32 %v93, %v137
    %139 = vdwg.mxu0
    %140 = vmatpush.bf16.msra.mxu0 0
    %141 = vmatpush.bf16.msra.mxu0 0
    %142 = vmatpush.bf16.msra.mxu0 0
    %143 = vmatpush.bf16.msra.mxu0 0
    %144 = vmatpush.bf16.msra.mxu0 0
    %145 = vmatpush.bf16.msra.mxu0 0
    %146 = vmatpush.bf16.msra.mxu0 %v117
    %147 = vmatpush.bf16.msra.mxu0 %v115
    %148 = vmatmul.bf16.gmra.mxu0 %v124
    %v149 = vpop.f32.mrf.mxu0
    %v150 = vadd.f32 %v94, %v149
    %v151 = vpop.f32.mrf.mxu0
    %v152 = vadd.f32 %v94, %v151
    %153 = vdwg.mxu0
    %v154 = vmax.f32 %v136, 0.0
    %v155 = vmax.f32 %v150, 0.0
    %v156 = vmax.f32 %v138, 0.0
    %v157 = vmax.f32 %v152, 0.0
    %v158 = vpack.c.bf16 %v156, %v154
    %v159 = vld [vmem:[#allocation7] sm:$0xf]
    %v160 = vld [vmem:[#allocation7 + $0x4] sm:$0xf]
    %v161 = vld [vmem:[#allocation7 + $0x8] sm:$0xf]
    %v162 = vld [vmem:[#allocation7 + $0xc] sm:$0xf]
    %v163 = vld [vmem:[#allocation7 + $0x10] sm:$0xf]
    %v164 = vld [vmem:[#allocation7 + $0x14] sm:$0xf]
    %v165 = vld [vmem:[#allocation7 + $0x18] sm:$0xf]
    %v166 = vld [vmem:[#allocation7 + $0x1c] sm:$0xf]
    %v167 = vld [vmem:[#allocation7 + $0x20] sm:$0xf]
    %v168 = vld [vmem:[#allocation7 + $0x24] sm:$0xf]
    %v169 = vld [vmem:[#allocation7 + $0x28] sm:$0xf]
    %v170 = vld [vmem:[#allocation7 + $0x2c] sm:$0xf]
    %v171 = vld [vmem:[#allocation7 + $0x30] sm:$0xf]
    %v172 = vld [vmem:[#allocation7 + $0x34] sm:$0xf]
    %v173 = vld [vmem:[#allocation7 + $0x38] sm:$0xf]
    %v174 = vld [vmem:[#allocation7 + $0x3c] sm:$0xf]
    %v175 = vld [vmem:[%s4] sm:$0x1]
    %v177 = vperm.slane %v175, 0
    %v195 = vunpack.c.l.b16 %v159
    %v196 = vunpack.c.l.b16 %v160
    %v197 = vunpack.c.l.b16 %v161
    %v198 = vunpack.c.l.b16 %v162
    %v199 = vunpack.c.l.b16 %v163
    %v200 = vunpack.c.l.b16 %v164
    %v201 = vunpack.c.l.b16 %v165
    %v202 = vunpack.c.l.b16 %v166
    %v203 = vunpack.c.l.b16 %v167
    %v204 = vunpack.c.l.b16 %v168
    %v205 = vunpack.c.l.b16 %v169
    %v206 = vunpack.c.l.b16 %v170
    %v207 = vunpack.c.l.b16 %v171
    %v208 = vunpack.c.l.b16 %v172
    %v209 = vunpack.c.l.b16 %v173
    %v210 = vunpack.c.l.b16 %v174
    %v211 = vpack.c.b16 %v196, %v195
    %v212 = vpack.c.b16 %v198, %v197
    %v213 = vpack.c.b16 %v200, %v199
    %v214 = vpack.c.b16 %v202, %v201
    %v215 = vpack.c.b16 %v204, %v203
    %v216 = vpack.c.b16 %v206, %v205
    %v217 = vpack.c.b16 %v208, %v207
    %v218 = vpack.c.b16 %v210, %v209
    %227 = vmatpush.bf16.msra.mxu0 %v218
    %228 = vmatpush.bf16.msra.mxu0 %v217
    %229 = vmatpush.bf16.msra.mxu0 %v216
    %230 = vmatpush.bf16.msra.mxu0 %v215
    %231 = vmatpush.bf16.msra.mxu0 %v214
    %232 = vmatpush.bf16.msra.mxu0 %v213
    %233 = vmatpush.bf16.msra.mxu0 %v212
    %234 = vmatpush.bf16.msra.mxu0 %v211
    %235 = vmatmul.bf16.gmra.mxu0 %v158
    %v236 = vpop.f32.mrf.mxu0
    %v237 = vadd.f32 %v177, %v236
    %v238 = vpop.f32.mrf.mxu0
    %v239 = vadd.f32 %v177, %v238
    %240 = vdwg.mxu0
    %v241 = vrot.slane %v155, 4
    %v242 = vadd.f32 %v155, %v241
    %v243 = vrot.slane %v242, 2
    %v244 = vadd.f32 %v242, %v243
    %v245 = vrot.slane %v244, 1
    %v246 = vadd.f32 %v244, %v245
    %v247 = vrot.slane %v157, 4
    %v248 = vadd.f32 %v157, %v247
    %v249 = vrot.slane %v248, 2
    %v250 = vadd.f32 %v248, %v249
    %v251 = vrot.slane %v250, 1
    %v252 = vadd.f32 %v250, %v251
    %v253 = vrcp.pop 8.0
    %v254 = vmul.f32 8.0, %v253
    %v255 = vsub.f32 1.0, %v254
    %v256 = vmul.f32 %v253, %v255
    %v257 = vadd.f32 %v253, %v256
    %vm258 = vweird.f32 %v253
    %v259 = vsel %vm258, %v253, %v257
    %v260 = vmul.f32 %v246, %v259
    %v261 = vmul.f32 %v252, %v259
    %v262 = vpack.c.bf16 %v260, %v260
    %v263 = vpack.c.bf16 %v261, %v261
    %v264 = vld [vmem:[#allocation7 + $0x40] sm:$0xf]
    %v265 = vld [vmem:[#allocation7 + $0x44] sm:$0xf]
    %v266 = vld [vmem:[#allocation7 + $0x48] sm:$0xf]
    %v267 = vld [vmem:[#allocation7 + $0x4c] sm:$0xf]
    %v268 = vld [vmem:[#allocation7 + $0x50] sm:$0xf]
    %v269 = vld [vmem:[#allocation7 + $0x54] sm:$0xf]
    %v270 = vld [vmem:[#allocation7 + $0x58] sm:$0xf]
    %v271 = vld [vmem:[#allocation7 + $0x5c] sm:$0xf]
    %v272 = vld [vmem:[#allocation7 + $0x60] sm:$0xf]
    %v273 = vld [vmem:[#allocation7 + $0x64] sm:$0xf]
    %v274 = vld [vmem:[#allocation7 + $0x68] sm:$0xf]
    %v275 = vld [vmem:[#allocation7 + $0x6c] sm:$0xf]
    %v276 = vld [vmem:[#allocation7 + $0x70] sm:$0xf]
    %v277 = vld [vmem:[#allocation7 + $0x74] sm:$0xf]
    %v278 = vld [vmem:[#allocation7 + $0x78] sm:$0xf]
    %v279 = vld [vmem:[#allocation7 + $0x7c] sm:$0xf]
    %v280 = vld [vmem:[%s5] sm:$0x1]
    %v282 = vperm.slane %v280, 0
    %v286 = vunpack.c.l.b16 %v262
    %v287 = vunpack.c.l.b16 %v263
    %vm288 = vcmask 1041409
    %v289 = vsel %vm288, %v287, %v286
    %v290 = vpack.c.b16 %v289, %v289
    %v308 = vunpack.c.l.b16 %v264
    %v309 = vunpack.c.l.b16 %v265
    %v310 = vunpack.c.l.b16 %v266
    %v311 = vunpack.c.l.b16 %v267
    %v312 = vunpack.c.l.b16 %v268
    %v313 = vunpack.c.l.b16 %v269
    %v314 = vunpack.c.l.b16 %v270
    %v315 = vunpack.c.l.b16 %v271
    %v316 = vunpack.c.l.b16 %v272
    %v317 = vunpack.c.l.b16 %v273
    %v318 = vunpack.c.l.b16 %v274
    %v319 = vunpack.c.l.b16 %v275
    %v320 = vunpack.c.l.b16 %v276
    %v321 = vunpack.c.l.b16 %v277
    %v322 = vunpack.c.l.b16 %v278
    %v323 = vunpack.c.l.b16 %v279
    %v324 = vpack.c.b16 %v309, %v308
    %v325 = vpack.c.b16 %v311, %v310
    %v326 = vpack.c.b16 %v313, %v312
    %v327 = vpack.c.b16 %v315, %v314
    %v328 = vpack.c.b16 %v317, %v316
    %v329 = vpack.c.b16 %v319, %v318
    %v330 = vpack.c.b16 %v321, %v320
    %v331 = vpack.c.b16 %v323, %v322
    %340 = vmatpush.bf16.msra.mxu0 %v331
    %341 = vmatpush.bf16.msra.mxu0 %v330
    %342 = vmatpush.bf16.msra.mxu0 %v329
    %343 = vmatpush.bf16.msra.mxu0 %v328
    %344 = vmatpush.bf16.msra.mxu0 %v327
    %345 = vmatpush.bf16.msra.mxu0 %v326
    %346 = vmatpush.bf16.msra.mxu0 %v325
    %347 = vmatpush.bf16.msra.mxu0 %v324
    %348 = vmatmul.bf16.gmra.mxu0 %v290
    %v349 = vpop.f32.mrf.mxu0
    %v350 = vadd.f32 %v282, %v349
    %v351 = vpop.f32.mrf.mxu0
    %352 = vdwg.mxu0
    %v354 = vrot.slane %v350, 1
    %v355 = vperm.slane %v350, 0
    %v356 = vperm.slane %v354, 0
    %v359 = vmul.f32 %v237, %v355
    %v360 = vmul.f32 %v239, %v356
    %361 = vadd.xlane.f32.xlu0 %v359
    %v362 = vpop.xlane.xlu0 %361
    %363 = vadd.xlane.f32.xlu0 %v360
    %v364 = vpop.xlane.xlu0 %363
    %v367 = vlaneseq
    %v368 = vand.u32 %v367, 127
    %v369 = vperm.slane %v362, %v368
    %v370 = vperm.slane %v364, %v368
    %v371 = vsel %vm288, %v370, %v369
    %vm373 = vcmask 58368
    %v374 = vsel %vm373, %v371, -inf
    %375 = vmax.xlane.f32.xlu0 %v374
    %v376 = vpop.xlane.xlu0 %375
    %v377 = vmul.f32 %v362, 2.0
    %v378 = vmul.f32 %v364, 2.0
    %v380 = vperm.slane %v376, 0
    %v381 = vperm.slane %v376, 1
    %v384 = vrcp.pop %v380
    %v385 = vmul.f32 %v380, %v384
    %v386 = vsub.f32 1.0, %v385
    %v387 = vmul.f32 %v384, %v386
    %v388 = vadd.f32 %v384, %v387
    %vm389 = vweird.f32 %v380
    %vm390 = vweird.f32 %v384
    %vm391 = vmor %vm389, %vm390
    %v392 = vsel %vm391, %v384, %v388
    %v393 = vand.u32 2147483647, %v380
    %vm394 = vcmp.eq.f32.partialorder %v393, 8.507059e+37
    %v395 = vand.u32 %v380, 2147483648
    %v396 = vor.u32 1.1754944e-38, %v395
    %v397 = vsel %vm394, %v396, %v392
    %v398 = vmul.f32 %v377, %v397
    %v399 = vrcp.pop %v381
    %v400 = vmul.f32 %v381, %v399
    %v401 = vsub.f32 1.0, %v400
    %v402 = vmul.f32 %v399, %v401
    %v403 = vadd.f32 %v399, %v402
    %vm404 = vweird.f32 %v381
    %vm405 = vweird.f32 %v399
    %vm406 = vmor %vm404, %vm405
    %v407 = vsel %vm406, %v399, %v403
    %v408 = vand.u32 2147483647, %v381
    %vm409 = vcmp.eq.f32.partialorder %v408, 8.507059e+37
    %v410 = vand.u32 %v381, 2147483648
    %v411 = vor.u32 1.1754944e-38, %v410
    %v412 = vsel %vm409, %v411, %v407
    %v413 = vmul.f32 %v378, %v412
    %416 = vset.pattern.permute.xlu0 0
    %417 = vperm.xlu0 %416, %v398
    %v418 = vpop.permute.xlu0 %417
    %419 = vset.pattern.permute.xlu0 0
    %420 = vperm.xlu0 %419, %v413
    %v421 = vpop.permute.xlu0 %420
    %v422 = vperm.slane %v418, %v368
    %v423 = vperm.slane %v421, %v368
    %v424 = vsel %vm288, %v423, %v422
    %v426 = vsel %vm373, %v424, -inf
    %427 = vmax.xlane.f32.xlu0 %v426
    %v428 = vpop.xlane.xlu0 %427
    %v430 = vperm.slane %v428, 0
    %v431 = vperm.slane %v428, 1
    %v434 = vsub.f32 %v398, %v430
    %v435 = vsub.f32 %v413, %v431
    %v436 = vmul.f32 %v434, 1.442695
    %v437 = vpow.pop %v436
    %v438 = vmul.f32 %v435, 1.442695
    %v439 = vpow.pop %v438
    %442 = vset.pattern.permute.xlu0 0
    %443 = vperm.xlu0 %442, %v437
    %v444 = vpop.permute.xlu0 %443
    %445 = vset.pattern.permute.xlu0 0
    %446 = vperm.xlu0 %445, %v439
    %v447 = vpop.permute.xlu0 %446
    %v448 = vperm.slane %v444, %v368
    %v449 = vperm.slane %v447, %v368
    %v450 = vsel %vm288, %v449, %v448
    %v452 = vsel %vm373, %v450, 0.0
    %453 = vadd.xlane.f32.xlu0 %v452
    %v454 = vpop.xlane.xlu0 %453
    %v455 = vrcp.pop %v454
    %v457 = vperm.slane %v455, 0
    %v458 = vperm.slane %v455, 1
    %v461 = vmul.f32 %v437, %v457
    %v462 = vmul.f32 %v439, %v458
    %465 = vset.pattern.permute.xlu0 0
    %466 = vperm.xlu0 %465, %v461
    %v467 = vpop.permute.xlu0 %466
    %468 = vset.pattern.permute.xlu0 0
    %469 = vperm.xlu0 %468, %v462
    %v470 = vpop.permute.xlu0 %469
    %v471 = vperm.slane %v467, %v368
    %v472 = vperm.slane %v470, %v368
    %v473 = vsel %vm288, %v472, %v471
    %475 = vxpose.xlu0.b32.start [1/16] %v473, 128
    %476 = vxpose.xlu0.b32.cont [2/16] 0.0, 128
    %477 = vxpose.xlu0.b32.cont [3/16] 0.0, 128
    %478 = vxpose.xlu0.b32.cont [4/16] 0.0, 128
    %479 = vxpose.xlu0.b32.cont [5/16] 0.0, 128
    %480 = vxpose.xlu0.b32.cont [6/16] 0.0, 128
    %481 = vxpose.xlu0.b32.cont [7/16] 0.0, 128
    %482 = vxpose.xlu0.b32.cont [8/16] 0.0, 128
    %483 = vxpose.xlu0.b32.cont [9/16] 0.0, 128
    %484 = vxpose.xlu0.b32.cont [10/16] 0.0, 128
    %485 = vxpose.xlu0.b32.cont [11/16] 0.0, 128
    %486 = vxpose.xlu0.b32.cont [12/16] 0.0, 128
    %487 = vxpose.xlu0.b32.cont [13/16] 0.0, 128
    %488 = vxpose.xlu0.b32.cont [14/16] 0.0, 128
    %489 = vxpose.xlu0.b32.cont [15/16] 0.0, 128
    %490 = vxpose.xlu0.b32.end [16/16] 0.0, 128
    %v491 = vpop.trf.xlu0
    %v492 = vpop.trf.xlu0
    %v493 = vpop.trf.xlu0
    %v494 = vpop.trf.xlu0
    %v495 = vpop.trf.xlu0
    %v496 = vpop.trf.xlu0
    %v497 = vpop.trf.xlu0
    %v498 = vpop.trf.xlu0
    %v499 = vpop.trf.xlu0
    %v500 = vpop.trf.xlu0
    %v501 = vpop.trf.xlu0
    %v502 = vpop.trf.xlu0
    %v503 = vpop.trf.xlu0
    %v504 = vpop.trf.xlu0
    %v505 = vpop.trf.xlu0
    %v506 = vpop.trf.xlu0
    %vm507 = vcmask 15360
    %508 = vst.msk [vmem:[%s6] sm:$0xff] %vm507, %v491
    // Predicated region
    $region42: #{tpu_custom_call.1} parent=1 // pred_check
      _
    $region43: #{tpu_custom_call.1} parent=1 // pred_check_branch
      %510 = sbr.rel (0) target = $region45
    $region44: #{tpu_custom_call.1} parent=1 // pred_region
      _
    $region45: #{tpu_custom_call.1} parent=1 // pred_fallthru
      _
    // Predicated region
    $region46: #{tpu_custom_call.1} parent=1 // pred_check
      _
    $region47: #{tpu_custom_call.1} parent=1 // pred_check_branch
      %512 = sbr.rel (0) target = $region49
    $region48: #{tpu_custom_call.1} parent=1 // pred_region
      _
    $region49: #{tpu_custom_call.1} parent=1 // pred_fallthru
      _
    %513 = vsyncpa [#allocation3], 1
    %514 = vsyncpa [#allocation5], 1
    %515 = vsyncpa [#allocation8], 1

</llo_original>
